<compile_context>
chip_gen: v7x
topology: tpu7x:2x2x1
jax: 0.10.0
libtpu: 0.0.40
codegen_flags: <defaults>
</compile_context>

<pallas_src>
import jax
import jax.numpy as jnp
from jax.experimental import pallas as pl
from jax.experimental.pallas import tpu as pltpu


def _paired_diag_dist_kernel(x_ref, y_ref, o_ref):
    """Accumulate sum-over-batch of paired euclidean distances.

    x_ref, y_ref: (Bt, M, Kt) blocks (K is the lane-dense minor dim)
    o_ref:        (1, Kt) accumulator, resident across the batch grid axis
    """
    # Zero the accumulator on the first batch step of this K tile.
    @pl.when(pl.program_id(1) == 0)
    def _():
        o_ref[...] = jnp.zeros_like(o_ref)

    xb = x_ref[...]                     # (Bt, M, Kt)
    yb = y_ref[...]                     # (Bt, M, Kt)
    m_dim = xb.shape[1]

    # Unrolled loop over the (tiny, static) feature dim M; everything stays as
    # lane-dense (Bt, Kt) 2-D tiles.
    d0 = xb[:, 0, :] - yb[:, 0, :]
    sq = d0 * d0
    for m in range(1, m_dim):
        dm = xb[:, m, :] - yb[:, m, :]
        sq = sq + dm * dm

    d = jnp.sqrt(sq)                                      # (Bt, Kt) per-sample distances
    o_ref[...] += jnp.sum(d, axis=0, keepdims=True)       # accumulate over batch tile


def euclidean_loss2(x, y, alt):
    """JAX/Pallas equivalent of EuclideanLoss2.forward(x, y, alt).

    x:   (B, P, M)   points
    y:   (B, M, R)   torch layout (transposed to (B, R, M) like the module)
    alt: (B, M, S)   only feeds dead code in the torch module -> unused
    """
    # `d = cdist(y[:,1:4,:], alt)` is dead code in the torch module (its result
    # is never used for the returned loss), so it is not computed.
    del alt

    x = x.astype(jnp.float32)
    y_t = jnp.swapaxes(y, 1, 2).astype(jnp.float32)       # (B, R, M)

    B, P, M = x.shape
    R = y_t.shape[1]
    K = min(P, R)                                         # diagonal length

    # Only paired rows are needed; put K in the lane (minor) dimension.
    x_k = jnp.swapaxes(x[:, :K, :], 1, 2)                 # (B, M, K)
    y_k = jnp.swapaxes(y_t[:, :K, :], 1, 2)               # (B, M, K)

    # --- K tiling (parallel grid axis; lets Mosaic use both v7x TensorCores) --
    if K >= 256:
        kt = 256                                          # multiple of 128 lanes
        k_pad = pl.cdiv(K, kt) * kt
        if k_pad != K:
            x_k = jnp.pad(x_k, ((0, 0), (0, 0), (0, k_pad - K)))
            y_k = jnp.pad(y_k, ((0, 0), (0, 0), (0, k_pad - K)))
    else:
        kt = K                                            # full-dim block is allowed
        k_pad = K
    nk = k_pad // kt

    # --- Batch tiling (reduction grid axis, innermost) ------------------------
    # Budget sized against v7x's smaller VMEM: ~4 MiB of live input per step,
    # double-buffered by the pipeline (~8 MiB total) + a tiny (1, kt) accumulator.
    bytes_per_sample = 2 * M * kt * 4                     # x + y, f32
    vmem_budget = 4 * 1024 * 1024
    bt = max(1, min(B, vmem_budget // max(bytes_per_sample, 1)))
    nb = pl.cdiv(B, bt)
    b_pad = nb * bt
    if b_pad != B:
        # Zero-padded samples contribute exactly 0 to the distance sum.
        x_k = jnp.pad(x_k, ((0, b_pad - B), (0, 0), (0, 0)))
        y_k = jnp.pad(y_k, ((0, b_pad - B), (0, 0), (0, 0)))

    dist_sum = pl.pallas_call(
        _paired_diag_dist_kernel,
        out_shape=jax.ShapeDtypeStruct((1, k_pad), jnp.float32),
        grid_spec=pltpu.PrefetchScalarGridSpec(
            num_scalar_prefetch=0,
            grid=(nk, nb),                                # reduction axis last
            in_specs=[
                pl.BlockSpec((bt, M, kt), lambda kb, bb: (bb, 0, kb)),
                pl.BlockSpec((bt, M, kt), lambda kb, bb: (bb, 0, kb)),
            ],
            out_specs=pl.BlockSpec((1, kt), lambda kb, bb: (0, kb)),
        ),
        compiler_params=pltpu.CompilerParams(
            dimension_semantics=("parallel", "arbitrary"),
            vmem_limit_bytes=32 * 1024 * 1024,            # <= physical on v5e/v6e/v7x
        ),
    )(x_k, y_k)

    # O(K) glue: fold 1/B here, apply diag[1:3] *= 1.5, mean.
    diag = dist_sum[0, :K] * (1.0 / B)
    idx = jnp.arange(K)
    weights = jnp.where((idx >= 1) & (idx < 3), 1.5, 1.0)
    return jnp.mean(diag * weights)


def _reference_loss(x, y, alt):
    """Pure-JAX reference (full cdist, exactly mirrors the torch module)."""
    del alt
    x = x.astype(jnp.float32)
    y_t = jnp.swapaxes(y, 1, 2).astype(jnp.float32)
    diff = x[:, :, None, :] - y_t[:, None, :, :]
    dist = jnp.sqrt(jnp.sum(diff * diff, axis=-1))        # (B, P, R)
    dist = jnp.mean(dist, axis=0)                         # (P, R)
    diag = jnp.diagonal(dist)
    k = diag.shape[0]
    idx = jnp.arange(k)
    w = jnp.where((idx >= 1) & (idx < 3), 1.5, 1.0)
    return jnp.mean(diag * w)


if __name__ == "__main__":
    key = jax.random.PRNGKey(0)
    kx, ky, ka = jax.random.split(key, 3)

    B, P, M, R, S = 2, 8, 4, 8, 6
    # x: (B, P, M) points; y: (B, M, R); alt: (B, M, S)  (torch layouts)
    x = jax.random.normal(kx, (B, P, M), dtype=jnp.float32)
    y = jax.random.normal(ky, (B, M, R), dtype=jnp.float32)
    alt = jax.random.normal(ka, (B, M, S), dtype=jnp.float32)

    loss = jax.block_until_ready(euclidean_loss2(x, y, alt))
    ref = jax.block_until_ready(_reference_loss(x, y, alt))
    assert jnp.allclose(loss, ref, rtol=1e-5, atol=1e-5), (loss, ref)

    print("KERNEL_OK")
</pallas_src>

<mosaic_0001>
module attributes {stable_mosaic.version = 11 : i64} {
  func.func @_paired_diag_dist_kernel(%arg0: i32, %arg1: i32, %arg2: memref<2x4x8xf32, #tpu.memory_space<vmem>>, %arg3: memref<2x4x8xf32, #tpu.memory_space<vmem>>, %arg4: memref<1x8xf32, #tpu.memory_space<vmem>>) attributes {dimension_semantics = [#tpu.dimension_semantics<parallel>, #tpu.dimension_semantics<arbitrary>], iteration_bounds = array<i64: 1, 1>, scalar_prefetch = 0 : i64, scratch_operands = 0 : i64, tpu.core_type = #tpu.core_type<tc>, window_params = [{transform_indices = @transform_0, window_bounds = array<i64: 2, 4, 8>}, {transform_indices = @transform_1, window_bounds = array<i64: 2, 4, 8>}, {transform_indices = @transform_2, window_bounds = array<i64: 1, 8>}]} {
    %c0_i32 = arith.constant 0 : i32
    %0 = arith.cmpi eq, %arg1, %c0_i32 : i32
    %1 = arith.extui %0 : i1 to i32
    %c0_i32_0 = arith.constant 0 : i32
    %2 = arith.cmpi ne, %1, %c0_i32_0 : i32
    scf.if %2 {
      %cst_10 = arith.constant 0.000000e+00 : f32
      %38 = vector.broadcast %cst_10 : f32 to vector<1x8xf32>
      %c0_11 = arith.constant 0 : index
      %c0_12 = arith.constant 0 : index
      %39 = vector.load %arg4[%c0_11, %c0_12] : memref<1x8xf32, #tpu.memory_space<vmem>>, vector<1x8xf32>
      tpu.vector_store %arg4[%c0_11, %c0_12], %38 {strides = array<i32>} : memref<1x8xf32, #tpu.memory_space<vmem>>, vector<1x8xf32>,
    } else {
    }
    %c0 = arith.constant 0 : index
    %c0_1 = arith.constant 0 : index
    %c0_2 = arith.constant 0 : index
    %3 = vector.load %arg2[%c0, %c0_1, %c0_2] : memref<2x4x8xf32, #tpu.memory_space<vmem>>, vector<2x4x8xf32>
    %c0_3 = arith.constant 0 : index
    %c0_4 = arith.constant 0 : index
    %c0_5 = arith.constant 0 : index
    %4 = vector.load %arg3[%c0_3, %c0_4, %c0_5] : memref<2x4x8xf32, #tpu.memory_space<vmem>>, vector<2x4x8xf32>
    %5 = vector.extract_strided_slice %3 {offsets = [0, 0, 0], sizes = [2, 1, 8], strides = [1, 1, 1]} : vector<2x4x8xf32> to vector<2x1x8xf32>
    %6 = vector.shape_cast %5 : vector<2x1x8xf32> to vector<2x8xf32>
    %7 = vector.extract_strided_slice %4 {offsets = [0, 0, 0], sizes = [2, 1, 8], strides = [1, 1, 1]} : vector<2x4x8xf32> to vector<2x1x8xf32>
    %8 = vector.shape_cast %7 : vector<2x1x8xf32> to vector<2x8xf32>
    %9 = arith.subf %6, %8 : vector<2x8xf32>
    %10 = arith.mulf %9, %9 : vector<2x8xf32>
    %11 = vector.extract_strided_slice %3 {offsets = [0, 1, 0], sizes = [2, 1, 8], strides = [1, 1, 1]} : vector<2x4x8xf32> to vector<2x1x8xf32>
    %12 = vector.shape_cast %11 : vector<2x1x8xf32> to vector<2x8xf32>
    %13 = vector.extract_strided_slice %4 {offsets = [0, 1, 0], sizes = [2, 1, 8], strides = [1, 1, 1]} : vector<2x4x8xf32> to vector<2x1x8xf32>
    %14 = vector.shape_cast %13 : vector<2x1x8xf32> to vector<2x8xf32>
    %15 = arith.subf %12, %14 : vector<2x8xf32>
    %16 = arith.mulf %15, %15 : vector<2x8xf32>
    %17 = arith.addf %10, %16 : vector<2x8xf32>
    %18 = vector.extract_strided_slice %3 {offsets = [0, 2, 0], sizes = [2, 1, 8], strides = [1, 1, 1]} : vector<2x4x8xf32> to vector<2x1x8xf32>
    %19 = vector.shape_cast %18 : vector<2x1x8xf32> to vector<2x8xf32>
    %20 = vector.extract_strided_slice %4 {offsets = [0, 2, 0], sizes = [2, 1, 8], strides = [1, 1, 1]} : vector<2x4x8xf32> to vector<2x1x8xf32>
    %21 = vector.shape_cast %20 : vector<2x1x8xf32> to vector<2x8xf32>
    %22 = arith.subf %19, %21 : vector<2x8xf32>
    %23 = arith.mulf %22, %22 : vector<2x8xf32>
    %24 = arith.addf %17, %23 : vector<2x8xf32>
    %25 = vector.extract_strided_slice %3 {offsets = [0, 3, 0], sizes = [2, 1, 8], strides = [1, 1, 1]} : vector<2x4x8xf32> to vector<2x1x8xf32>
    %26 = vector.shape_cast %25 : vector<2x1x8xf32> to vector<2x8xf32>
    %27 = vector.extract_strided_slice %4 {offsets = [0, 3, 0], sizes = [2, 1, 8], strides = [1, 1, 1]} : vector<2x4x8xf32> to vector<2x1x8xf32>
    %28 = vector.shape_cast %27 : vector<2x1x8xf32> to vector<2x8xf32>
    %29 = arith.subf %26, %28 : vector<2x8xf32>
    %30 = arith.mulf %29, %29 : vector<2x8xf32>
    %31 = arith.addf %24, %30 : vector<2x8xf32>
    %32 = math.sqrt %31 : vector<2x8xf32>
    %c0_6 = arith.constant 0 : index
    %c0_7 = arith.constant 0 : index
    %33 = vector.load %arg4[%c0_6, %c0_7] : memref<1x8xf32, #tpu.memory_space<vmem>>, vector<1x8xf32>
    %cst = arith.constant dense<0.000000e+00> : vector<8xf32>
    %34 = vector.multi_reduction <add>, %32, %cst [0] : vector<2x8xf32> to vector<8xf32>
    %35 = vector.shape_cast %34 : vector<8xf32> to vector<1x8xf32>
    %36 = arith.addf %33, %35 : vector<1x8xf32>
    %c0_8 = arith.constant 0 : index
    %c0_9 = arith.constant 0 : index
    %37 = vector.load %arg4[%c0_8, %c0_9] : memref<1x8xf32, #tpu.memory_space<vmem>>, vector<1x8xf32>
    tpu.vector_store %arg4[%c0_8, %c0_9], %36 {strides = array<i32>} : memref<1x8xf32, #tpu.memory_space<vmem>>, vector<1x8xf32>,
    return
  }
  func.func @transform_0(%arg0: i32, %arg1: i32) -> (i32, i32, i32) {
    %c0_i32 = arith.constant 0 : i32
    %c0_i32_0 = arith.constant 0 : i32
    return %arg1, %c0_i32, %arg0 : i32, i32, i32
  }
  func.func @transform_1(%arg0: i32, %arg1: i32) -> (i32, i32, i32) {
    %c0_i32 = arith.constant 0 : i32
    %c0_i32_0 = arith.constant 0 : i32
    return %arg1, %c0_i32, %arg0 : i32, i32, i32
  }
  func.func @transform_2(%arg0: i32, %arg1: i32) -> (i32, i32) {
    %c0_i32 = arith.constant 0 : i32
    %c0_i32_0 = arith.constant 0 : i32
    return %c0_i32, %arg0 : i32, i32
  }
}

</mosaic_0001>

<llo_original>
// kernel: tpu_custom_call.1
$region0: #{tpu_custom_call.1}
  #allocation0 [shape = 'u32[]', space=smem, size = 0x4, offset = 0x4, fixed_abs, tag = 'smem constant byte address 0x4 - core index']
  #allocation1 [shape = 'u32[144,128]{1,0:T(1,128)}', space=vmem, size = 0x12000, scoped, tag = 'internal scratch']
  %s0 = inlined_call_operand.hbm [shape: f32[2,4,8], index: 0, kind: input, shape index: {}]
  %s1 = inlined_call_operand.hbm [shape: f32[2,4,8], index: 1, kind: input, shape index: {}]
  %s2 = inlined_call_operand.hbm [shape: f32[1,8], index: 2, kind: output, shape index: {}]
  %s3 = sld [smem:[#allocation0]]
  $region30: #{tpu_custom_call.1} parent=0
    _
  %s5 = ssub.s32 1, %s3
  %s6 = scalar_select 0, %s5, %s3
  $region1: #{tpu_custom_call.1} parent=0
    #allocation2 [shape = 'u8[4096]{0}', space=vmem, size = 0x1000, scoped, tag = 'input window, operand 0, single buffered']
    #allocation3 [shape = 's32[1]{0}', space=sflag, size = 0x4, scoped, tag = 'scoped memory for tpu_custom_call.1']
    #allocation4 [shape = 's32[1]{0}', space=sflag, size = 0x4, scoped, tag = 'scoped memory for tpu_custom_call.1']
    #allocation5 [shape = 'u8[4096]{0}', space=vmem, size = 0x1000, scoped, tag = 'input window, operand 1, single buffered']
    #allocation6 [shape = 's32[1]{0}', space=sflag, size = 0x4, scoped, tag = 'scoped memory for tpu_custom_call.1']
    #allocation7 [shape = 'u8[512]{0}', space=vmem, size = 0x400, scoped, tag = 'output window, operand 0, single buffered']
    %7 = vsyncpa [#allocation3], 0
    %8 = vsyncpa [#allocation6], 0
    %9 = vsyncpa [#allocation4], 0
    // Predicated region
    $region2: #{tpu_custom_call.1} parent=1 // pred_check
      _
    $region3: #{tpu_custom_call.1} parent=1 // pred_check_branch
      %11 = sbr.rel (0) target = $region5
    $region4: #{tpu_custom_call.1} parent=1 // pred_region
      %s13 = ssub.s32 128, 128
      %14 = vsyncadd [#allocation3], %s13
      %s15 = sshll.u32 [#allocation2], 4
      %s16 = int_to_ptr.vmem [resolvable:$true] %s15
      %21 = dma.hbm_to_vmem [thread:$0]  %s0, 128, %s16, [#allocation3], 64, 64, 4
    $region5: #{tpu_custom_call.1} parent=1 // pred_fallthru
      _
    // Predicated region
    $region6: #{tpu_custom_call.1} parent=1 // pred_check
      _
    $region7: #{tpu_custom_call.1} parent=1 // pred_check_branch
      %23 = sbr.rel (0) target = $region9
    $region8: #{tpu_custom_call.1} parent=1 // pred_region
      %s25 = ssub.s32 128, 128
      %26 = vsyncadd [#allocation6], %s25
      %s27 = sshll.u32 [#allocation5], 4
      %s28 = int_to_ptr.vmem [resolvable:$true] %s27
      %33 = dma.hbm_to_vmem [thread:$0]  %s1, 128, %s28, [#allocation6], 64, 64, 4
    $region9: #{tpu_custom_call.1} parent=1 // pred_fallthru
      _
    // Predicated region
    $region10: #{tpu_custom_call.1} parent=1 // pred_check
      _
    $region11: #{tpu_custom_call.1} parent=1 // pred_check_branch
      %35 = sbr.rel (0) target = $region13
    $region12: #{tpu_custom_call.1} parent=1 // pred_region
      %36 = dma.done [#allocation3], 128
    $region13: #{tpu_custom_call.1} parent=1 // pred_fallthru
      _
    // Predicated region
    $region14: #{tpu_custom_call.1} parent=1 // pred_check
      _
    $region15: #{tpu_custom_call.1} parent=1 // pred_check_branch
      %38 = sbr.rel (0) target = $region17
    $region16: #{tpu_custom_call.1} parent=1 // pred_region
      %39 = dma.done [#allocation6], 128
    $region17: #{tpu_custom_call.1} parent=1 // pred_fallthru
      _
    %p40 = scmp.eq.s32.totalorder 0, 0
    // Predicated region
    $region18: #{tpu_custom_call.1} parent=1 // pred_check
      %p41 = pneg %p40
    $region19: #{tpu_custom_call.1} parent=1 // pred_check_branch
      %43 = sbr.rel (%p41) target = $region21
    $region20: #{tpu_custom_call.1} parent=1 // pred_region
      %vm44 = vcmask 57344
      %45 = vst.msk [vmem:[#allocation7] sm:$0x1] %vm44, 0.0
    $region21: #{tpu_custom_call.1} parent=1 // pred_fallthru
      _
    %v46 = vld [vmem:[#allocation2] sm:$0xf]
    %v47 = vld [vmem:[#allocation2 + $0x4] sm:$0xf]
    %v48 = vld [vmem:[#allocation5] sm:$0xf]
    %v49 = vld [vmem:[#allocation5 + $0x4] sm:$0xf]
    %v50 = vsub.f32 %v46, %v48
    %v51 = vsub.f32 %v47, %v49
    %v52 = vmul.f32 %v50, %v50
    %v53 = vmul.f32 %v51, %v51
    %v56 = vrot.slane %v52, 1
    %v57 = vrot.slane %v53, 1
    %v60 = vadd.f32 %v52, %v56
    %v61 = vadd.f32 %v53, %v57
    %v62 = vrot.slane %v52, 2
    %v63 = vrot.slane %v53, 2
    %v66 = vadd.f32 %v60, %v62
    %v67 = vadd.f32 %v61, %v63
    %v68 = vrot.slane %v52, 3
    %v69 = vrot.slane %v53, 3
    %v72 = vadd.f32 %v66, %v68
    %v73 = vadd.f32 %v67, %v69
    %v74 = vrsqrt.pop %v72
    %v75 = vmul.f32 %v72, %v74
    %vm76 = vcmp.eq.f32.partialorder %v72, inf
    %v77 = vsel %vm76, %v72, %v75
    %vm78 = vcmp.eq.f32.partialorder %v72, 0.0
    %v79 = vand.u32 %v72, 2147483648
    %v80 = vsel %vm78, %v79, %v77
    %v81 = vrsqrt.pop %v73
    %v82 = vmul.f32 %v73, %v81
    %vm83 = vcmp.eq.f32.partialorder %v73, inf
    %v84 = vsel %vm83, %v73, %v82
    %vm85 = vcmp.eq.f32.partialorder %v73, 0.0
    %v86 = vand.u32 %v73, 2147483648
    %v87 = vsel %vm85, %v86, %v84
    %v88 = vld [vmem:[#allocation7] sm:$0x1]
    %v91 = vrot.slane %v87, 7
    %vm92 = vcmask 1041409
    %v93 = vsel %vm92, %v91, %v80
    %vm95 = vcmask 58368
    %v96 = vsel %vm95, %v93, 0.0
    %v97 = vrot.slane %v96, 4
    %v98 = vadd.f32 %v96, %v97
    %v99 = vrot.slane %v98, 2
    %v100 = vadd.f32 %v98, %v99
    %v101 = vrot.slane %v100, 1
    %v102 = vadd.f32 %v100, %v101
    %v103 = vadd.f32 %v88, %v102
    %vm104 = vcmask 57344
    %105 = vst.msk [vmem:[#allocation7] sm:$0x1] %vm104, %v103
    // Predicated region
    $region22: #{tpu_custom_call.1} parent=1 // pred_check
      _
    $region23: #{tpu_custom_call.1} parent=1 // pred_check_branch
      %107 = sbr.rel (0) target = $region25
    $region24: #{tpu_custom_call.1} parent=1 // pred_region
      %s109 = ssub.s32 16, 16
      %110 = vsyncadd [#allocation4], %s109
      %s112 = sshll.u32 [#allocation7], 4
      %s113 = int_to_ptr.vmem [resolvable:$true] %s112
      %115 = dma.vmem_to_hbm [thread:$0]  %s113, 16, %s2, [#allocation4]
    $region25: #{tpu_custom_call.1} parent=1 // pred_fallthru
      _
    // Predicated region
    $region26: #{tpu_custom_call.1} parent=1 // pred_check
      _
    $region27: #{tpu_custom_call.1} parent=1 // pred_check_branch
      %117 = sbr.rel (0) target = $region29
    $region28: #{tpu_custom_call.1} parent=1 // pred_region
      %118 = dma.done [#allocation4], 16
    $region29: #{tpu_custom_call.1} parent=1 // pred_fallthru
      _
    %119 = vsyncpa [#allocation3], 1
    %120 = vsyncpa [#allocation6], 1
    %121 = vsyncpa [#allocation4], 1

</llo_original>
